<compile_context>
chip_gen: v7x
topology: tpu7x:2x2x1
jax: 0.10.0
libtpu: 0.0.40
codegen_flags: <defaults>
</compile_context>

<pallas_src>
import functools

import jax
import jax.numpy as jnp
from jax.experimental import pallas as pl
from jax.experimental.pallas import tpu as pltpu

LANES = 128
TILE_ROWS_MAX = 2048  # 2048x128 f32 = 1 MiB/tile; x2 inputs x2 buffers = 4 MiB


def _round_up(x, m):
    return (x + m - 1) // m * m


def _focal_sum_kernel(p_ref, t_ref, o_ref, acc_ref, *, gamma, alpha, total,
                      tile_rows, needs_mask):
    i = pl.program_id(0)
    nsteps = pl.num_programs(0)

    @pl.when(i == 0)
    def _():
        acc_ref[...] = jnp.zeros_like(acc_ref)

    p = p_ref[...].astype(jnp.float32)
    t = t_ref[...].astype(jnp.float32)

    # Shared-exponential sigmoid/log formulation: 3 EUP ops per element
    # (exp, log, divide) instead of sigmoid + 2 logs (+ 2 float pows).
    e = jnp.exp(-p)                     # EUP
    pt = 1.0 / (1.0 + e)                # EUP (divide); == sigmoid(p)
    log_pt = -jnp.log(1.0 + e)          # EUP;          == log(sigmoid(p))
    log_1m_pt = log_pt - p              # VPU;          == log(1 - sigmoid(p))
    one_m_pt = 1.0 - pt

    g = float(gamma)
    if g == 2.0:                                  # default: VPU multiplies
        w_pos = one_m_pt * one_m_pt
        w_neg = pt * pt
    elif g.is_integer() and 0.0 <= g <= 8.0:      # small int powers -> VPU
        w_pos = one_m_pt ** int(g)
        w_neg = pt ** int(g)
    else:                                         # general float pow -> EUP
        w_pos = one_m_pt ** g
        w_neg = pt ** g

    loss = ((-alpha) * w_pos * t * log_pt
            - (1.0 - alpha) * w_neg * (1.0 - t) * log_1m_pt)

    def _accumulate(l):
        # Fold tile_rows down to 8 sublanes with pure VPU adds; the cross-lane
        # reduce happens exactly once, on the final grid step.
        acc_ref[...] += jnp.sum(l.reshape(-1, 8, LANES), axis=0)

    if needs_mask:
        # Only the last tile can contain padding (wrapper tail pad and/or the
        # ragged Pallas block); interior tiles accumulate unmasked.
        @pl.when(i < nsteps - 1)
        def _():
            _accumulate(loss)

        @pl.when(i == nsteps - 1)
        def _():
            grow = (jax.lax.broadcasted_iota(jnp.int32, loss.shape, 0)
                    + i * tile_rows)
            full_rows = total // LANES
            rem = total % LANES
            mask = grow < full_rows
            if rem:
                col = jax.lax.broadcasted_iota(jnp.int32, loss.shape, 1)
                mask = jnp.logical_or(
                    mask, jnp.logical_and(grow == full_rows, col < rem))
            _accumulate(jnp.where(mask, loss, 0.0))
    else:
        _accumulate(loss)

    @pl.when(i == nsteps - 1)
    def _():
        o_ref[0, 0] = jnp.sum(acc_ref[...])


def bce_focal_loss(predict, target, gamma=2.0, alpha=0.25, reduction="mean"):
    assert predict.shape == target.shape
    total = int(predict.size)

    # Lane-dense 2-D slab, keeping the caller's dtype (cast to f32 in-kernel).
    p_flat = predict.reshape(-1)
    t_flat = target.reshape(-1)
    rem = total % LANES
    if rem:
        # Only the ragged tail (<128 elems) gets padded; padded values are
        # masked out in-kernel.  When total % 128 == 0 the reshape is free.
        pad = LANES - rem
        p_flat = jnp.pad(p_flat, (0, pad))
        t_flat = jnp.pad(t_flat, (0, pad))
    rows = (total + LANES - 1) // LANES
    p2d = p_flat.reshape(rows, LANES)
    t2d = t_flat.reshape(rows, LANES)

    # Sublane packing multiple: 8 for 4-byte, 16 for 2-byte, 32 for 1-byte.
    sub = 8
    for a in (p2d, t2d):
        sub = max(sub, 8 * max(1, 4 // jnp.dtype(a.dtype).itemsize))
    tile_rows = min(TILE_ROWS_MAX, _round_up(rows, sub))
    grid_steps = pl.cdiv(rows, tile_rows)
    needs_mask = (grid_steps * tile_rows * LANES) != total

    # TODO(synk): on v7x a leading 'parallel' axis could split the reduction
    # across both TensorCores (partial sums combined in the wrapper).
    kernel = functools.partial(
        _focal_sum_kernel, gamma=float(gamma), alpha=float(alpha),
        total=total, tile_rows=tile_rows, needs_mask=needs_mask)

    loss_sum = pl.pallas_call(
        kernel,
        out_shape=jax.ShapeDtypeStruct((1, 1), jnp.float32),
        grid_spec=pltpu.PrefetchScalarGridSpec(
            num_scalar_prefetch=0,
            grid=(grid_steps,),
            in_specs=[
                pl.BlockSpec((tile_rows, LANES), lambda i: (i, 0)),
                pl.BlockSpec((tile_rows, LANES), lambda i: (i, 0)),
            ],
            out_specs=pl.BlockSpec((1, 1), lambda i: (0, 0),
                                   memory_space=pltpu.SMEM),
            scratch_shapes=[pltpu.VMEM((8, LANES), jnp.float32)],
        ),
        compiler_params=pltpu.CompilerParams(
            dimension_semantics=("arbitrary",)),
    )(p2d, t2d)[0, 0]

    if reduction == "mean":
        return loss_sum / jnp.float32(total)
    elif reduction == "sum":
        return loss_sum
    else:
        # TODO(synk): reduction='none' would require returning the full
        # per-element loss map; only 'mean'/'sum' are reduced in-kernel here.
        raise NotImplementedError("only 'mean' and 'sum' reductions supported")


def _reference(predict, target, gamma=2.0, alpha=0.25):
    pt = jax.nn.sigmoid(predict.astype(jnp.float32))
    t = target.astype(jnp.float32)
    loss = (-alpha * (1 - pt) ** gamma * t * jnp.log(pt)
            - (1 - alpha) * pt ** gamma * (1 - t) * jnp.log(1 - pt))
    return jnp.mean(loss)


if __name__ == "__main__":
    key = jax.random.PRNGKey(0)
    k1, k2 = jax.random.split(key)
    # Synthetic logits + binary targets, NCHW (2, 4, 16, 16).
    predict = jax.random.normal(k1, (2, 4, 16, 16), jnp.float32) * 2.0
    target = (jax.random.uniform(k2, (2, 4, 16, 16)) > 0.5).astype(jnp.float32)

    out = bce_focal_loss(predict, target, gamma=2.0, alpha=0.25,
                         reduction="mean")
    out = jax.block_until_ready(out)

    ref = _reference(predict, target)
    assert jnp.allclose(out, ref, rtol=1e-5, atol=1e-6), (out, ref)
    print("KERNEL_OK")
</pallas_src>

<mosaic_0001>
module attributes {stable_mosaic.version = 11 : i64} {
  func.func @_focal_sum_kernel(%arg0: i32, %arg1: memref<16x128xf32, #tpu.memory_space<vmem>>, %arg2: memref<16x128xf32, #tpu.memory_space<vmem>>, %arg3: memref<1x1xf32, #tpu.memory_space<smem>>, %arg4: memref<8x128xf32, #tpu.memory_space<vmem>>) attributes {dimension_semantics = [#tpu.dimension_semantics<arbitrary>], iteration_bounds = array<i64: 1>, scalar_prefetch = 0 : i64, scratch_operands = 1 : i64, tpu.core_type = #tpu.core_type<tc>, window_params = [{transform_indices = @transform_0, window_bounds = array<i64: 16, 128>}, {transform_indices = @transform_1, window_bounds = array<i64: 16, 128>}, {transform_indices = @transform_2, window_bounds = array<i64: 1, 1>}]} {
    %c0_i32 = arith.constant 0 : i32
    %0 = arith.cmpi eq, %arg0, %c0_i32 : i32
    %1 = arith.extui %0 : i1 to i32
    %c0_i32_0 = arith.constant 0 : i32
    %2 = arith.cmpi ne, %1, %c0_i32_0 : i32
    scf.if %2 {
      %cst_19 = arith.constant 0.000000e+00 : f32
      %41 = vector.broadcast %cst_19 : f32 to vector<8x128xf32>
      %c0_20 = arith.constant 0 : index
      %c0_21 = arith.constant 0 : index
      %42 = vector.load %arg4[%c0_20, %c0_21] : memref<8x128xf32, #tpu.memory_space<vmem>>, vector<8x128xf32>
      tpu.vector_store %arg4[%c0_20, %c0_21], %41 {strides = array<i32>} : memref<8x128xf32, #tpu.memory_space<vmem>>, vector<8x128xf32>,
    } else {
    }
    %c0 = arith.constant 0 : index
    %c0_1 = arith.constant 0 : index
    %3 = vector.load %arg1[%c0, %c0_1] : memref<16x128xf32, #tpu.memory_space<vmem>>, vector<16x128xf32>
    %c0_2 = arith.constant 0 : index
    %c0_3 = arith.constant 0 : index
    %4 = vector.load %arg2[%c0_2, %c0_3] : memref<16x128xf32, #tpu.memory_space<vmem>>, vector<16x128xf32>
    %cst = arith.constant 0.000000e+00 : f32
    %5 = vector.broadcast %cst : f32 to vector<16x128xf32>
    %6 = arith.subf %5, %3 : vector<16x128xf32>
    %7 = math.exp %6 : vector<16x128xf32>
    %cst_4 = arith.constant 1.000000e+00 : f32
    %8 = vector.broadcast %cst_4 : f32 to vector<16x128xf32>
    %9 = arith.addf %8, %7 : vector<16x128xf32>
    %cst_5 = arith.constant 1.000000e+00 : f32
    %10 = vector.broadcast %cst_5 : f32 to vector<16x128xf32>
    %11 = arith.divf %10, %9 : vector<16x128xf32>
    %cst_6 = arith.constant 1.000000e+00 : f32
    %12 = vector.broadcast %cst_6 : f32 to vector<16x128xf32>
    %13 = arith.addf %12, %7 : vector<16x128xf32>
    %14 = math.log %13 : vector<16x128xf32>
    %cst_7 = arith.constant 0.000000e+00 : f32
    %15 = vector.broadcast %cst_7 : f32 to vector<16x128xf32>
    %16 = arith.subf %15, %14 : vector<16x128xf32>
    %17 = arith.subf %16, %3 : vector<16x128xf32>
    %cst_8 = arith.constant 1.000000e+00 : f32
    %18 = vector.broadcast %cst_8 : f32 to vector<16x128xf32>
    %19 = arith.subf %18, %11 : vector<16x128xf32>
    %20 = arith.mulf %19, %19 : vector<16x128xf32>
    %21 = arith.mulf %11, %11 : vector<16x128xf32>
    %cst_9 = arith.constant -2.500000e-01 : f32
    %22 = vector.broadcast %cst_9 : f32 to vector<16x128xf32>
    %23 = arith.mulf %22, %20 : vector<16x128xf32>
    %24 = arith.mulf %23, %4 : vector<16x128xf32>
    %25 = arith.mulf %24, %16 : vector<16x128xf32>
    %cst_10 = arith.constant 7.500000e-01 : f32
    %26 = vector.broadcast %cst_10 : f32 to vector<16x128xf32>
    %27 = arith.mulf %26, %21 : vector<16x128xf32>
    %cst_11 = arith.constant 1.000000e+00 : f32
    %28 = vector.broadcast %cst_11 : f32 to vector<16x128xf32>
    %29 = arith.subf %28, %4 : vector<16x128xf32>
    %30 = arith.mulf %27, %29 : vector<16x128xf32>
    %31 = arith.mulf %30, %17 : vector<16x128xf32>
    %32 = arith.subf %25, %31 : vector<16x128xf32>
    %c0_12 = arith.constant 0 : index
    %c0_13 = arith.constant 0 : index
    %33 = vector.load %arg4[%c0_12, %c0_13] : memref<8x128xf32, #tpu.memory_space<vmem>>, vector<8x128xf32>
    %34 = vector.shape_cast %32 : vector<16x128xf32> to vector<2x8x128xf32>
    %cst_14 = arith.constant dense<0.000000e+00> : vector<8x128xf32>
    %35 = vector.multi_reduction <add>, %34, %cst_14 [0] : vector<2x8x128xf32> to vector<8x128xf32>
    %36 = arith.addf %33, %35 : vector<8x128xf32>
    %c0_15 = arith.constant 0 : index
    %c0_16 = arith.constant 0 : index
    %37 = vector.load %arg4[%c0_15, %c0_16] : memref<8x128xf32, #tpu.memory_space<vmem>>, vector<8x128xf32>
    tpu.vector_store %arg4[%c0_15, %c0_16], %36 {strides = array<i32>} : memref<8x128xf32, #tpu.memory_space<vmem>>, vector<8x128xf32>,
    %c0_i32_17 = arith.constant 0 : i32
    %38 = arith.cmpi eq, %arg0, %c0_i32_17 : i32
    %39 = arith.extui %38 : i1 to i32
    %c0_i32_18 = arith.constant 0 : i32
    %40 = arith.cmpi ne, %39, %c0_i32_18 : i32
    scf.if %40 {
      %c0_19 = arith.constant 0 : index
      %c0_20 = arith.constant 0 : index
      %41 = vector.load %arg4[%c0_19, %c0_20] : memref<8x128xf32, #tpu.memory_space<vmem>>, vector<8x128xf32>
      %42 = vector.shape_cast %41 : vector<8x128xf32> to vector<1x8x128xf32>
      %cst_21 = arith.constant dense<0.000000e+00> : vector<1xf32>
      %43 = vector.multi_reduction <add>, %42, %cst_21 [1, 2] : vector<1x8x128xf32> to vector<1xf32>
      %44 = vector.shape_cast %43 : vector<1xf32> to vector<1x1x1xf32>
      %45 = vector.extract %44[0, 0, 0] : f32 from vector<1x1x1xf32>
      %c0_22 = arith.constant 0 : index
      %c0_23 = arith.constant 0 : index
      %46 = memref.load %arg3[%c0_22, %c0_23] : memref<1x1xf32, #tpu.memory_space<smem>>
      memref.store %45, %arg3[%c0_22, %c0_23] : memref<1x1xf32, #tpu.memory_space<smem>>
    } else {
    }
    return
  }
  func.func @transform_0(%arg0: i32) -> (i32, i32) {
    %c0_i32 = arith.constant 0 : i32
    %c0_i32_0 = arith.constant 0 : i32
    return %arg0, %c0_i32 : i32, i32
  }
  func.func @transform_1(%arg0: i32) -> (i32, i32) {
    %c0_i32 = arith.constant 0 : i32
    %c0_i32_0 = arith.constant 0 : i32
    return %arg0, %c0_i32 : i32, i32
  }
  func.func @transform_2(%arg0: i32) -> (i32, i32) {
    %c0_i32 = arith.constant 0 : i32
    %c0_i32_0 = arith.constant 0 : i32
    %c0_i32_1 = arith.constant 0 : i32
    return %c0_i32, %c0_i32_0 : i32, i32
  }
}

</mosaic_0001>

<llo_original>
// kernel: tpu_custom_call.1
$region0: #{tpu_custom_call.1}
  #allocation0 [shape = 'u32[]', space=smem, size = 0x4, offset = 0x4, fixed_abs, tag = 'smem constant byte address 0x4 - core index']
  #allocation1 [shape = 'u32[144,128]{1,0:T(1,128)}', space=vmem, size = 0x12000, scoped, tag = 'internal scratch']
  #allocation2 [shape = 'f32[8,128]{1,0:T(8,128)}', space=vmem, size = 0x1000, scoped, tag = 'scratch operand']
  %s0 = inlined_call_operand.hbm [shape: f32[16,128], index: 0, kind: input, shape index: {}]
  %s1 = inlined_call_operand.hbm [shape: f32[16,128], index: 1, kind: input, shape index: {}]
  %s2 = inlined_call_operand.hbm [shape: f32[1,1], index: 2, kind: output, shape index: {}]
  %s3 = sld [smem:[#allocation0]]
  $region34: #{tpu_custom_call.1} parent=0
    _
  %s5 = ssub.s32 1, %s3
  %s6 = scalar_select 0, %s5, %s3
  $region1: #{tpu_custom_call.1} parent=0
    #allocation3 [shape = 'u8[8192]{0}', space=vmem, size = 0x2000, scoped, tag = 'input window, operand 0, single buffered']
    #allocation4 [shape = 's32[1]{0}', space=sflag, size = 0x4, scoped, tag = 'scoped memory for tpu_custom_call.1']
    #allocation5 [shape = 's32[1]{0}', space=sflag, size = 0x4, scoped, tag = 'scoped memory for tpu_custom_call.1']
    #allocation6 [shape = 'u8[8192]{0}', space=vmem, size = 0x2000, scoped, tag = 'input window, operand 1, single buffered']
    #allocation7 [shape = 's32[1]{0}', space=sflag, size = 0x4, scoped, tag = 'scoped memory for tpu_custom_call.1']
    #allocation8 [shape = 'u8[512]{0}', space=smem, size = 0x200, scoped, tag = 'output window, operand 0, single buffered']
    %7 = vsyncpa [#allocation4], 0
    %8 = vsyncpa [#allocation7], 0
    %9 = vsyncpa [#allocation5], 0
    // Predicated region
    $region2: #{tpu_custom_call.1} parent=1 // pred_check
      _
    $region3: #{tpu_custom_call.1} parent=1 // pred_check_branch
      %11 = sbr.rel (0) target = $region5
    $region4: #{tpu_custom_call.1} parent=1 // pred_region
      %s13 = ssub.s32 256, 256
      %14 = vsyncadd [#allocation4], %s13
      %s15 = sshll.u32 [#allocation3], 4
      %s16 = int_to_ptr.vmem [resolvable:$true] %s15
      %21 = dma.hbm_to_vmem [thread:$0]  %s0, 256, %s16, [#allocation4], 128, 128, 8
    $region5: #{tpu_custom_call.1} parent=1 // pred_fallthru
      _
    // Predicated region
    $region6: #{tpu_custom_call.1} parent=1 // pred_check
      _
    $region7: #{tpu_custom_call.1} parent=1 // pred_check_branch
      %23 = sbr.rel (0) target = $region9
    $region8: #{tpu_custom_call.1} parent=1 // pred_region
      %s25 = ssub.s32 256, 256
      %26 = vsyncadd [#allocation7], %s25
      %s27 = sshll.u32 [#allocation6], 4
      %s28 = int_to_ptr.vmem [resolvable:$true] %s27
      %33 = dma.hbm_to_vmem [thread:$0]  %s1, 256, %s28, [#allocation7], 128, 128, 8
    $region9: #{tpu_custom_call.1} parent=1 // pred_fallthru
      _
    // Predicated region
    $region10: #{tpu_custom_call.1} parent=1 // pred_check
      _
    $region11: #{tpu_custom_call.1} parent=1 // pred_check_branch
      %35 = sbr.rel (0) target = $region13
    $region12: #{tpu_custom_call.1} parent=1 // pred_region
      %36 = dma.done [#allocation4], 256
    $region13: #{tpu_custom_call.1} parent=1 // pred_fallthru
      _
    // Predicated region
    $region14: #{tpu_custom_call.1} parent=1 // pred_check
      _
    $region15: #{tpu_custom_call.1} parent=1 // pred_check_branch
      %38 = sbr.rel (0) target = $region17
    $region16: #{tpu_custom_call.1} parent=1 // pred_region
      %39 = dma.done [#allocation7], 256
    $region17: #{tpu_custom_call.1} parent=1 // pred_fallthru
      _
    %p40 = scmp.eq.s32.totalorder 0, 0
    // Predicated region
    $region18: #{tpu_custom_call.1} parent=1 // pred_check
      %p41 = pneg %p40
    $region19: #{tpu_custom_call.1} parent=1 // pred_check_branch
      %43 = sbr.rel (%p41) target = $region21
    $region20: #{tpu_custom_call.1} parent=1 // pred_region
      %44 = vst [vmem:[#allocation2] sm:$0xff] 0.0
    $region21: #{tpu_custom_call.1} parent=1 // pred_fallthru
      _
    %v45 = vld [vmem:[#allocation3] sm:$0xff]
    %v46 = vld [vmem:[#allocation3 + $0x8] sm:$0xff]
    %v47 = vld [vmem:[#allocation6] sm:$0xff]
    %v48 = vld [vmem:[#allocation6 + $0x8] sm:$0xff]
    %v49 = vsub.f32 0.0, %v45
    %v50 = vsub.f32 0.0, %v46
    %v51 = vmul.f32 %v49, 1.442695
    %v52 = vpow.pop %v51
    %v53 = vmul.f32 %v50, 1.442695
    %v54 = vpow.pop %v53
    %v55 = vadd.f32 %v52, 1.0
    %v56 = vadd.f32 %v54, 1.0
    %v57 = vrcp.pop %v55
    %v58 = vmul.f32 1.0, %v57
    %v59 = vrcp.pop %v56
    %v60 = vmul.f32 1.0, %v59
    %v61 = vlog2.pop %v55
    %v62 = vmul.f32 %v61, 0.6931472
    %v63 = vlog2.pop %v56
    %v64 = vmul.f32 %v63, 0.6931472
    %v65 = vsub.f32 0.0, %v62
    %v66 = vsub.f32 0.0, %v64
    %v67 = vsub.f32 %v65, %v45
    %v68 = vsub.f32 %v66, %v46
    %v69 = vsub.f32 1.0, %v58
    %v70 = vsub.f32 1.0, %v60
    %v71 = vmul.f32 %v69, %v69
    %v72 = vmul.f32 %v70, %v70
    %v73 = vmul.f32 %v58, %v58
    %v74 = vmul.f32 %v60, %v60
    %v75 = vmul.f32 %v71, -0.25
    %v76 = vmul.f32 %v72, -0.25
    %v77 = vmul.f32 %v75, %v47
    %v78 = vmul.f32 %v76, %v48
    %v79 = vmul.f32 %v77, %v65
    %v80 = vmul.f32 %v78, %v66
    %v81 = vmul.f32 %v73, 0.75
    %v82 = vmul.f32 %v74, 0.75
    %v83 = vsub.f32 1.0, %v47
    %v84 = vsub.f32 1.0, %v48
    %v85 = vmul.f32 %v81, %v83
    %v86 = vmul.f32 %v82, %v84
    %v87 = vmul.f32 %v85, %v67
    %v88 = vmul.f32 %v86, %v68
    %v89 = vsub.f32 %v79, %v87
    %v90 = vsub.f32 %v80, %v88
    %v91 = vld [vmem:[#allocation2] sm:$0xff]
    %v92 = vadd.f32 %v89, %v90
    %v93 = vadd.f32 %v91, %v92
    %94 = vst [vmem:[#allocation2] sm:$0xff] %v93
    // Predicated region
    $region22: #{tpu_custom_call.1} parent=1 // pred_check
      %p95 = pneg %p40
    $region23: #{tpu_custom_call.1} parent=1 // pred_check_branch
      %97 = sbr.rel (%p95) target = $region25
    $region24: #{tpu_custom_call.1} parent=1 // pred_region
      %v98 = vld [vmem:[#allocation2] sm:$0xff]
      %99 = vadd.xlane.f32.xlu0 %v98
      %v100 = vpop.xlane.xlu0 %99
      %v101 = vrot.slane %v100, 4
      %v102 = vadd.f32 %v100, %v101
      %v103 = vrot.slane %v102, 2
      %v104 = vadd.f32 %v102, %v103
      %v105 = vrot.slane %v104, 1
      %v106 = vadd.f32 %v104, %v105
      %s107 = vtos %v106
      %s108 = scalar_lea.smem [#allocation8], 0
      %109 = sst [smem:[%s108]] %s107
    $region25: #{tpu_custom_call.1} parent=1 // pred_fallthru
      _
    // Predicated region
    $region26: #{tpu_custom_call.1} parent=1 // pred_check
      _
    $region27: #{tpu_custom_call.1} parent=1 // pred_check_branch
      %111 = sbr.rel (0) target = $region29
    $region28: #{tpu_custom_call.1} parent=1 // pred_region
      %s113 = ssub.s32 16, 16
      %114 = vsyncadd [#allocation5], %s113
      %117 = dma.smem_to_hbm [#allocation8], 16, %s2, [#allocation5]
    $region29: #{tpu_custom_call.1} parent=1 // pred_fallthru
      _
    // Predicated region
    $region30: #{tpu_custom_call.1} parent=1 // pred_check
      _
    $region31: #{tpu_custom_call.1} parent=1 // pred_check_branch
      %119 = sbr.rel (0) target = $region33
    $region32: #{tpu_custom_call.1} parent=1 // pred_region
      %120 = dma.done [#allocation5], 16
    $region33: #{tpu_custom_call.1} parent=1 // pred_fallthru
      _
    %121 = sfence
    %122 = vsyncpa [#allocation4], 1
    %123 = vsyncpa [#allocation7], 1
    %124 = vsyncpa [#allocation5], 1

</llo_original>
